<compile_context>
chip_gen: v7x
topology: tpu7x:2x2x1
jax: 0.10.0
libtpu: 0.0.40
codegen_flags: <defaults>
</compile_context>

<pallas_src>
import functools

import jax
import jax.numpy as jnp
from jax.experimental import pallas as pl
from jax.experimental.pallas import tpu as pltpu

_LANE = 128


def _round_up(x, m):
    return ((x + m - 1) // m) * m


def _pick_spatial_tile(C, cout_pad, hw, n_batch, x_itemsize, out_itemsize, w_itemsize):
    """Choose the spatial tile (lanes) and an explicit scoped-VMEM limit."""
    try:
        vmem_cap = int(pltpu.get_tpu_info().vmem_capacity_bytes)
    except Exception:  # pragma: no cover - conservative fallback (v7x per-core)
        vmem_cap = 64 << 20

    budget = min(vmem_cap // 2, 48 << 20)  # double-buffered working-set target
    weight_bytes = cout_pad * (C * w_itemsize + 4)          # fused W + f32 bias
    per_lane = 2 * (C * x_itemsize + cout_pad * out_itemsize)  # 2x = double buffer

    hw_al = _round_up(hw, _LANE)
    avail = max(budget - 2 * weight_bytes, per_lane * _LANE)
    thw = max(_LANE, (avail // per_lane) // _LANE * _LANE)
    thw = min(thw, hw_al)

    # v7x has 2 TensorCores: make sure the parallel grid has >= 2 blocks.
    if n_batch * pl.cdiv(hw_al, thw) < 2 and hw > _LANE:
        thw = _round_up(pl.cdiv(hw, 2), _LANE)

    working = per_lane * thw + 2 * weight_bytes
    vmem_limit = int(min(vmem_cap * 3 // 4, max(working + (8 << 20), 32 << 20)))
    return int(thw), vmem_limit


def _make_fused_heads_kernel(head_splits):
    """head_splits: static tuple of (channel_offset, out_channels) per task."""

    def kernel(x_ref, w_ref, b_ref, *o_refs):
        # x_ref: (1, C, thw)  encoding tile (spatial on lanes)
        # w_ref: (Cout_pad, C) fused head weights (bf16, resident)
        # b_ref: (Cout_pad, 1) fused head biases (f32, resident)
        # o_refs[t]: (1, cout_t, thw) per-task output tile
        x = x_ref[0].astype(w_ref.dtype)                                   # (C, thw)
        acc = jnp.dot(w_ref[...], x, preferred_element_type=jnp.float32)   # (Cout_pad, thw)
        acc = acc + b_ref[...]                                             # lane-broadcast bias
        for o_ref, (off, cout) in zip(o_refs, head_splits):
            o_ref[0] = acc[off:off + cout].astype(o_ref.dtype)

    return kernel


def _run_fused_heads(x3d, w_all, b2d, task_slices):
    """x3d: (N, C, HW); w_all: (Cout_pad, C) bf16; b2d: (Cout_pad, 1) f32.

    Returns a tuple of per-task arrays, shapes (N, cout_t, HW), dtype = x3d.dtype.
    """
    N, C, HW = x3d.shape
    cout_pad = w_all.shape[0]
    out_dtype = x3d.dtype

    thw, vmem_limit = _pick_spatial_tile(
        C, cout_pad, HW, N,
        x_itemsize=jnp.dtype(x3d.dtype).itemsize,
        out_itemsize=jnp.dtype(out_dtype).itemsize,
        w_itemsize=jnp.dtype(w_all.dtype).itemsize)

    n_sp = pl.cdiv(HW, thw)

    # Put the longer parallel axis first so megacore splits it across cores.
    sp_major = n_sp >= N
    if sp_major:
        grid = (n_sp, N)

        def data_map(s, n):
            return (n, 0, s)
    else:
        grid = (N, n_sp)

        def data_map(n, s):
            return (n, 0, s)

    def const_map(a, b):
        return (0, 0)

    head_splits = tuple((off, cout) for (_t, off, cout) in task_slices)
    kernel = _make_fused_heads_kernel(head_splits)

    out_shapes = tuple(
        jax.ShapeDtypeStruct((N, cout, HW), out_dtype)
        for (_t, _off, cout) in task_slices)
    out_specs = tuple(
        pl.BlockSpec((1, cout, thw), data_map)
        for (_t, _off, cout) in task_slices)

    outs = pl.pallas_call(
        kernel,
        out_shape=out_shapes,
        grid_spec=pltpu.PrefetchScalarGridSpec(
            num_scalar_prefetch=0,
            grid=grid,
            in_specs=[
                pl.BlockSpec((1, C, thw), data_map),        # encoding tile
                pl.BlockSpec((cout_pad, C), const_map),     # fused weights (resident)
                pl.BlockSpec((cout_pad, 1), const_map),     # fused bias (resident)
            ],
            out_specs=out_specs,
        ),
        compiler_params=pltpu.CompilerParams(
            dimension_semantics=("parallel", "parallel"),
            vmem_limit_bytes=vmem_limit,
        ),
    )(x3d, w_all, b2d)
    return outs


def _mt_decoder_forward(encoding, w_all, b2d, *, task_slices):
    # encoding: NCHW.  Merging H,W and the per-task (N,cout,HW)->(N,cout,H,W)
    # reshapes are metadata-only (no extra HBM pass).
    N, C, H, W = encoding.shape
    x3d = encoding.reshape(N, C, H * W)
    outs = _run_fused_heads(x3d, w_all, b2d, task_slices)
    return {task: out.reshape(N, cout, H, W)
            for (task, _off, cout), out in zip(task_slices, outs)}


class MTDecoderPallas:
    """Multi-task decoder: all 1x1-conv task heads fused into one Pallas matmul."""

    def __init__(self, task_configs, in_channels, key, compute_dtype=jnp.bfloat16):
        ws, bs, slices = [], [], []
        off = 0
        for cfg in task_configs:
            task = cfg["task"]
            cout = cfg["task_head_config"]["args"]["out_channels"]
            key, kw, kb = jax.random.split(key, 3)
            w = jax.random.normal(kw, (cout, in_channels), jnp.float32) * 0.02
            b = jax.random.normal(kb, (cout,), jnp.float32) * 0.01
            ws.append(w)
            bs.append(b)
            slices.append((task, off, cout))
            off += cout

        cout_tot = off
        cout_pad = _round_up(max(cout_tot, 1), 8)   # dense f32 sublanes / MXU rows
        w_all = jnp.concatenate(ws, axis=0)          # (Cout_tot, C)
        b_all = jnp.concatenate(bs, axis=0)          # (Cout_tot,)
        if cout_pad != cout_tot:
            w_all = jnp.pad(w_all, ((0, cout_pad - cout_tot), (0, 0)))
            b_all = jnp.pad(b_all, ((0, cout_pad - cout_tot),))

        self.task_slices = tuple(slices)
        self.in_channels = in_channels
        self.w_all_f32 = w_all                                # reference copy
        self.w_all = w_all.astype(compute_dtype)              # kernel weights (bf16)
        self.b_all = b_all.reshape(cout_pad, 1).astype(jnp.float32)

        # Weights/biases are runtime jit args (traced), NOT static constants.
        self._forward = jax.jit(
            functools.partial(_mt_decoder_forward, task_slices=self.task_slices))

    def __call__(self, encoding):
        return self._forward(encoding, self.w_all, self.b_all)


if __name__ == "__main__":
    key = jax.random.PRNGKey(0)
    k_in, k_params = jax.random.split(key)

    # Small, shape-consistent example: batch=2, channels=32, spatial=16x16.
    N, C, H, W = 2, 32, 16, 16
    encoding = jax.random.normal(k_in, (N, C, H, W), jnp.float32)

    task_configs = [
        {"task": "segmentation",
         "task_head_config": {"class": "ConvHead", "args": {"out_channels": 8}}},
        {"task": "depth",
         "task_head_config": {"class": "ConvHead", "args": {"out_channels": 1}}},
    ]

    decoder = MTDecoderPallas(task_configs, in_channels=C, key=k_params)
    preds = decoder(encoding)
    preds = jax.block_until_ready(preds)

    # Correctness check against a plain-JAX reference (1x1 conv per task),
    # using the same bf16-rounded inputs the kernel feeds to the MXU.
    x_bf = encoding.astype(jnp.bfloat16).astype(jnp.float32)
    for task, off, cout in decoder.task_slices:
        w = decoder.w_all[off:off + cout].astype(jnp.float32)   # bf16-rounded weights
        b = decoder.b_all[off:off + cout, 0]
        ref = jnp.einsum("oc,nchw->nohw", w, x_bf,
                         precision=jax.lax.Precision.HIGHEST)
        ref = ref + b[None, :, None, None]
        assert preds[task].shape == (N, cout, H, W), preds[task].shape
        err = float(jnp.max(jnp.abs(preds[task] - ref)))
        assert err < 2e-2, f"{task}: max abs err {err}"

    print("KERNEL_OK")
</pallas_src>

<mosaic_0001>
module attributes {stable_mosaic.version = 11 : i64} {
  func.func @kernel(%arg0: i32, %arg1: i32, %arg2: memref<1x32x256xf32, #tpu.memory_space<vmem>>, %arg3: memref<16x32xbf16, #tpu.memory_space<vmem>>, %arg4: memref<16x1xf32, #tpu.memory_space<vmem>>, %arg5: memref<1x8x256xf32, #tpu.memory_space<vmem>>, %arg6: memref<1x1x256xf32, #tpu.memory_space<vmem>>) attributes {dimension_semantics = [#tpu.dimension_semantics<parallel>, #tpu.dimension_semantics<parallel>], iteration_bounds = array<i64: 2, 1>, scalar_prefetch = 0 : i64, scratch_operands = 0 : i64, tpu.core_type = #tpu.core_type<tc>, window_params = [{transform_indices = @transform_0, window_bounds = array<i64: 1, 32, 256>}, {pipeline_mode = #tpu.pipeline_mode<synchronous>, transform_indices = @transform_1, window_bounds = array<i64: 16, 32>}, {pipeline_mode = #tpu.pipeline_mode<synchronous>, transform_indices = @transform_2, window_bounds = array<i64: 16, 1>}, {transform_indices = @transform_3, window_bounds = array<i64: 1, 8, 256>}, {transform_indices = @transform_4, window_bounds = array<i64: 1, 1, 256>}]} {
    %c0 = arith.constant 0 : index
    %c0_0 = arith.constant 0 : index
    %c0_1 = arith.constant 0 : index
    %0 = vector.load %arg2[%c0, %c0_0, %c0_1] : memref<1x32x256xf32, #tpu.memory_space<vmem>>, vector<1x32x256xf32>
    %1 = vector.shape_cast %0 : vector<1x32x256xf32> to vector<32x256xf32>
    %2 = arith.truncf %1 : vector<32x256xf32> to vector<32x256xbf16>
    %c0_2 = arith.constant 0 : index
    %c0_3 = arith.constant 0 : index
    %3 = vector.load %arg3[%c0_2, %c0_3] : memref<16x32xbf16, #tpu.memory_space<vmem>>, vector<16x32xbf16>
    %cst = arith.constant dense<0.000000e+00> : vector<16x256xf32>
    %4 = tpu.matmul %3, %2, %cst {dimension_numbers = #tpu.dot_dimension_numbers<[1], [0], [0], [1], [0, 0, 1, 1], [], []>} : vector<16x32xbf16>, vector<32x256xbf16>, vector<16x256xf32> -> vector<16x256xf32>
    %c0_4 = arith.constant 0 : index
    %c0_5 = arith.constant 0 : index
    %5 = vector.load %arg4[%c0_4, %c0_5] : memref<16x1xf32, #tpu.memory_space<vmem>>, vector<16x1xf32>
    %6 = vector.broadcast %5 : vector<16x1xf32> to vector<16x256xf32>
    %7 = arith.addf %4, %6 : vector<16x256xf32>
    %8 = vector.extract_strided_slice %7 {offsets = [0, 0], sizes = [8, 256], strides = [1, 1]} : vector<16x256xf32> to vector<8x256xf32>
    %c0_6 = arith.constant 0 : index
    %c0_7 = arith.constant 0 : index
    %c0_8 = arith.constant 0 : index
    %9 = vector.load %arg5[%c0_6, %c0_7, %c0_8] : memref<1x8x256xf32, #tpu.memory_space<vmem>>, vector<1x8x256xf32>
    %10 = vector.shape_cast %9 : vector<1x8x256xf32> to vector<8x256xf32>
    %11 = vector.shape_cast %8 : vector<8x256xf32> to vector<1x8x256xf32>
    tpu.vector_store %arg5[%c0_6, %c0_7, %c0_8], %11 {strides = array<i32>} : memref<1x8x256xf32, #tpu.memory_space<vmem>>, vector<1x8x256xf32>,
    %12 = vector.extract_strided_slice %7 {offsets = [8, 0], sizes = [1, 256], strides = [1, 1]} : vector<16x256xf32> to vector<1x256xf32>
    %c0_9 = arith.constant 0 : index
    %c0_10 = arith.constant 0 : index
    %c0_11 = arith.constant 0 : index
    %13 = vector.load %arg6[%c0_9, %c0_10, %c0_11] : memref<1x1x256xf32, #tpu.memory_space<vmem>>, vector<1x1x256xf32>
    %14 = vector.shape_cast %13 : vector<1x1x256xf32> to vector<1x256xf32>
    %15 = vector.shape_cast %12 : vector<1x256xf32> to vector<1x1x256xf32>
    tpu.vector_store %arg6[%c0_9, %c0_10, %c0_11], %15 {strides = array<i32>} : memref<1x1x256xf32, #tpu.memory_space<vmem>>, vector<1x1x256xf32>,
    return
  }
  func.func @transform_0(%arg0: i32, %arg1: i32) -> (i32, i32, i32) {
    %c0_i32 = arith.constant 0 : i32
    %c0_i32_0 = arith.constant 0 : i32
    return %arg0, %c0_i32, %arg1 : i32, i32, i32
  }
  func.func @transform_1(%arg0: i32, %arg1: i32) -> (i32, i32) {
    %c0_i32 = arith.constant 0 : i32
    %c0_i32_0 = arith.constant 0 : i32
    %c0_i32_1 = arith.constant 0 : i32
    return %c0_i32, %c0_i32_0 : i32, i32
  }
  func.func @transform_2(%arg0: i32, %arg1: i32) -> (i32, i32) {
    %c0_i32 = arith.constant 0 : i32
    %c0_i32_0 = arith.constant 0 : i32
    %c0_i32_1 = arith.constant 0 : i32
    return %c0_i32, %c0_i32_0 : i32, i32
  }
  func.func @transform_3(%arg0: i32, %arg1: i32) -> (i32, i32, i32) {
    %c0_i32 = arith.constant 0 : i32
    %c0_i32_0 = arith.constant 0 : i32
    return %arg0, %c0_i32, %arg1 : i32, i32, i32
  }
  func.func @transform_4(%arg0: i32, %arg1: i32) -> (i32, i32, i32) {
    %c0_i32 = arith.constant 0 : i32
    %c0_i32_0 = arith.constant 0 : i32
    return %arg0, %c0_i32, %arg1 : i32, i32, i32
  }
}

</mosaic_0001>

<llo_original>
// kernel: _mt_decoder_forward.1
$region0: #{_mt_decoder_forward.1}
  #allocation0 [shape = 'u32[]', space=smem, size = 0x4, offset = 0x4, fixed_abs, tag = 'smem constant byte address 0x4 - core index']
  #allocation1 [shape = 'u32[144,128]{1,0:T(1,128)}', space=vmem, size = 0x12000, scoped, tag = 'internal scratch']
  %s0 = inlined_call_operand.vmem [shape: f32[2,32,256], index: 0, kind: input, shape index: {}]
  %s1 = inlined_call_operand.vmem [shape: bf16[16,32], index: 1, kind: input, shape index: {}]
  %s2 = inlined_call_operand.vmem [shape: f32[16,1], index: 2, kind: input, shape index: {}]
  %s3 = inlined_call_operand.vmem [shape: f32[2,8,256], index: 3, kind: output, shape index: {0}]
  %s4 = inlined_call_operand.vmem [shape: f32[2,1,256], index: 4, kind: output, shape index: {1}]
  %5 = xla_tuple %s3, %s4
  %s6 = sld [smem:[#allocation0]]
  $region53: #{_mt_decoder_forward.1} parent=0
    _
  %s8 = ssub.s32 1, %s6
  %s9 = scalar_select 0, %s8, %s6
  loop: start=0, step=1, limit=4
  $region2: #{_mt_decoder_forward.1} parent=0 // loop_pre_header
    _
  $region3: #{_mt_decoder_forward.1} parent=0 // loop_header
    %s11 = sphi 0, %s15
    %p12 = scmp.ge.s32.totalorder %s11, 4
    %s18 = sphi 0, %s30
    %s19 = sphi 0, %s26
    %s20 = sphi 0, %s18
    %s21 = sphi 0, %s19
    %s22 = sphi 0, %s20
    %s23 = sphi 0, %s21
    %s35 = sphi 0, %s37
    %s38 = sphi 0, %s35
    %s39 = sphi 0, %s38
    %s55 = sphi 0, %s39
    %s59 = sphi 0, %s59
    %s61 = sphi 0, %s59
    %s62 = sphi 0, %s61
    %s76 = sphi 0, %s62
    %s80 = sphi 0, %s80
    %s82 = sphi 0, %s80
    %s83 = sphi 0, %s82
    %s97 = sphi 0, %s83
    %s105 = sphi 0, %s107
    %s108 = sphi 0, %s105
    %s109 = sphi 0, %s108
    %s125 = sphi 0, %s109
    %s133 = sphi 0, %s135
    %s136 = sphi 0, %s133
    %s137 = sphi 0, %s136
    %s153 = sphi 0, %s137
  $region4: #{_mt_decoder_forward.1} parent=0 // loop_header_branch
    %14 = sbr.rel (%p12) target = $region8
  $region5: #{_mt_decoder_forward.1} parent=0 // loop_body
    %s16 = ssub.s32 %s11, 1
    %s17 = ssub.s32 %s11, 2
    %s24 = sadd.s32 1, %s19
    %p25 = scmp.ge.s32.totalorder %s24, 1
    %s26 = scalar_select %p25, 0, %s24
    %s27 = sadd.s32 1, %s18
    %s28 = scalar_select %p25, %s27, %s18
    %p29 = scmp.ge.s32.totalorder %s28, 2
    %s30 = scalar_select %p29, 0, %s28
    %s31 = ssub.s32 %s18, %s30
    %s32 = ssub.s32 %s19, %s26
    %s33 = sor.u32 %s31, %s32
    %p34 = scmp.eq.s32.totalorder %s33, 0
    %s36 = sadd.s32 %s35, 1
    %s37 = scalar_select %p34, %s35, %s36
    %p40 = pneg %p34
    %p41 = scmp.eq.s32.totalorder %s11, 1
    %p42 = por %p40, %p41
    %p43 = scmp.ne.s32.totalorder %s35, %s38
    %p44 = scmp.eq.s32.totalorder %s11, 0
    %p45 = por %p43, %p44
    %p46 = scmp.ne.s32.totalorder %s35, %s38
    %p47 = scmp.eq.s32.totalorder %s16, 1
    %p48 = por %p46, %p47
    %p49 = scmp.ne.s32.totalorder %s38, %s39
    %p50 = scmp.eq.s32.totalorder %s16, 0
    %p51 = por %p49, %p50
    %p52 = scmp.ne.s32.totalorder %s38, %s39
    %p53 = scmp.eq.s32.totalorder %s17, 1
    %p54 = por %p52, %p53
    %p56 = scmp.ne.s32.totalorder %s39, %s55
    %p57 = scmp.eq.s32.totalorder %s17, 0
    %p58 = por %p56, %p57
    %s60 = sadd.s32 %s59, 1
    %p63 = scmp.eq.s32.totalorder %s11, 1
    %p64 = scmp.ne.s32.totalorder %s59, %s61
    %p65 = scmp.eq.s32.totalorder %s11, 0
    %p66 = por %p64, %p65
    %p67 = scmp.ne.s32.totalorder %s59, %s61
    %p68 = scmp.eq.s32.totalorder %s16, 1
    %p69 = por %p67, %p68
    %p70 = scmp.ne.s32.totalorder %s61, %s62
    %p71 = scmp.eq.s32.totalorder %s16, 0
    %p72 = por %p70, %p71
    %p73 = scmp.ne.s32.totalorder %s61, %s62
    %p74 = scmp.eq.s32.totalorder %s17, 1
    %p75 = por %p73, %p74
    %p77 = scmp.ne.s32.totalorder %s62, %s76
    %p78 = scmp.eq.s32.totalorder %s17, 0
    %p79 = por %p77, %p78
    %s81 = sadd.s32 %s80, 1
    %p84 = scmp.eq.s32.totalorder %s11, 1
    %p85 = scmp.ne.s32.totalorder %s80, %s82
    %p86 = scmp.eq.s32.totalorder %s11, 0
    %p87 = por %p85, %p86
    %p88 = scmp.ne.s32.totalorder %s80, %s82
    %p89 = scmp.eq.s32.totalorder %s16, 1
    %p90 = por %p88, %p89
    %p91 = scmp.ne.s32.totalorder %s82, %s83
    %p92 = scmp.eq.s32.totalorder %s16, 0
    %p93 = por %p91, %p92
    %p94 = scmp.ne.s32.totalorder %s82, %s83
    %p95 = scmp.eq.s32.totalorder %s17, 1
    %p96 = por %p94, %p95
    %p98 = scmp.ne.s32.totalorder %s83, %s97
    %p99 = scmp.eq.s32.totalorder %s17, 0
    %p100 = por %p98, %p99
    %s101 = ssub.s32 %s18, %s30
    %s102 = ssub.s32 %s19, %s26
    %s103 = sor.u32 %s101, %s102
    %p104 = scmp.eq.s32.totalorder %s103, 0
    %s106 = sadd.s32 %s105, 1
    %s107 = scalar_select %p104, %s105, %s106
    %p110 = pneg %p104
    %p111 = scmp.eq.s32.totalorder %s11, 1
    %p112 = por %p110, %p111
    %p113 = scmp.ne.s32.totalorder %s105, %s108
    %p114 = scmp.eq.s32.totalorder %s11, 0
    %p115 = por %p113, %p114
    %p116 = scmp.ne.s32.totalorder %s105, %s108
    %p117 = scmp.eq.s32.totalorder %s16, 1
    %p118 = por %p116, %p117
    %p119 = scmp.ne.s32.totalorder %s108, %s109
    %p120 = scmp.eq.s32.totalorder %s16, 0
    %p121 = por %p119, %p120
    %p122 = scmp.ne.s32.totalorder %s108, %s109
    %p123 = scmp.eq.s32.totalorder %s17, 1
    %p124 = por %p122, %p123
    %p126 = scmp.ne.s32.totalorder %s109, %s125
    %p127 = scmp.eq.s32.totalorder %s17, 0
    %p128 = por %p126, %p127
    %s129 = ssub.s32 %s18, %s30
    %s130 = ssub.s32 %s19, %s26
    %s131 = sor.u32 %s129, %s130
    %p132 = scmp.eq.s32.totalorder %s131, 0
    %s134 = sadd.s32 %s133, 1
    %s135 = scalar_select %p132, %s133, %s134
    %p138 = pneg %p132
    %p139 = scmp.eq.s32.totalorder %s11, 1
    %p140 = por %p138, %p139
    %p141 = scmp.ne.s32.totalorder %s133, %s136
    %p142 = scmp.eq.s32.totalorder %s11, 0
    %p143 = por %p141, %p142
    %p144 = scmp.ne.s32.totalorder %s133, %s136
    %p145 = scmp.eq.s32.totalorder %s16, 1
    %p146 = por %p144, %p145
    %p147 = scmp.ne.s32.totalorder %s136, %s137
    %p148 = scmp.eq.s32.totalorder %s16, 0
    %p149 = por %p147, %p148
    %p150 = scmp.ne.s32.totalorder %s136, %s137
    %p151 = scmp.eq.s32.totalorder %s17, 1
    %p152 = por %p150, %p151
    %p154 = scmp.ne.s32.totalorder %s137, %s153
    %p155 = scmp.eq.s32.totalorder %s17, 0
    %p156 = por %p154, %p155
    %p157 = scmp.le.s32.totalorder 1, %s11
    %p158 = scmp.lt.s32.totalorder %s11, 3
    %p159 = pnand %p157, %p158
    %p160 = pneg %p159
    // Predicated region
    $region9: #{_mt_decoder_forward.1} parent=5 // pred_check
      _
    $region10: #{_mt_decoder_forward.1} parent=5 // pred_check_branch
      %162 = sbr.rel (%p159) target = $region12
    $region11: #{_mt_decoder_forward.1} parent=5 // pred_region
      %s163 = ssub.s32 %s11, 1
      // Predicated region
      $region13: #{_mt_decoder_forward.1} parent=11 // pred_check
        %p164 = pneg %p72
      $region14: #{_mt_decoder_forward.1} parent=11 // pred_check_branch
        %166 = sbr.rel (%p164) target = $region16
      $region15: #{_mt_decoder_forward.1} parent=11 // pred_region
        _
      $region16: #{_mt_decoder_forward.1} parent=11 // pred_fallthru
        _
      // Predicated region
      $region17: #{_mt_decoder_forward.1} parent=11 // pred_check
        %p167 = pneg %p93
      $region18: #{_mt_decoder_forward.1} parent=11 // pred_check_branch
        %169 = sbr.rel (%p167) target = $region20
      $region19: #{_mt_decoder_forward.1} parent=11 // pred_region
        _
      $region20: #{_mt_decoder_forward.1} parent=11 // pred_fallthru
        _
    $region12: #{_mt_decoder_forward.1} parent=5 // pred_fallthru
      _
    %p170 = scmp.lt.s32.totalorder %s11, 2
    // Predicated region
    $region21: #{_mt_decoder_forward.1} parent=5 // pred_check
      %p171 = pneg %p170
    $region22: #{_mt_decoder_forward.1} parent=5 // pred_check_branch
      %173 = sbr.rel (%p171) target = $region24
    $region23: #{_mt_decoder_forward.1} parent=5 // pred_region
      // Predicated region
      $region25: #{_mt_decoder_forward.1} parent=23 // pred_check
        %p174 = pneg %p45
      $region26: #{_mt_decoder_forward.1} parent=23 // pred_check_branch
        %176 = sbr.rel (%p174) target = $region28
      $region27: #{_mt_decoder_forward.1} parent=23 // pred_region
        %s177 = smul.u32 2, %s19
        %p178 = scmp.lt.s32.totalorder %s18, 1
        %s179 = scalar_select %p178, %s18, 1
        %p180 = scmp.lt.s32.totalorder %s177, 1
        %s181 = scalar_select %p180, %s177, 1
        %s182 = smul.addr %s179, 8
        %s183 = sadd.s32 %s181, %s182
        %s184 = smul.addr %s183, 8
        %s185 = scalar_lea.vmem %s0, %s184
        %s186 = smul.u32 2, %s19
      $region28: #{_mt_decoder_forward.1} parent=23 // pred_fallthru
        _
    $region24: #{_mt_decoder_forward.1} parent=5 // pred_fallthru
      _
    %p187 = scmp.le.s32.totalorder 1, %s11
    %p188 = scmp.lt.s32.totalorder %s11, 3
    %p189 = pnand %p187, %p188
    %p190 = pneg %p189
    // Predicated region
    $region29: #{_mt_decoder_forward.1} parent=5 // pred_check
      _
    $region30: #{_mt_decoder_forward.1} parent=5 // pred_check_branch
      %192 = sbr.rel (%p189) target = $region32
    $region31: #{_mt_decoder_forward.1} parent=5 // pred_region
      %s193 = ssub.s32 %s11, 1
      %s194 = smul.u32 2, %s21
      %p195 = scmp.lt.s32.totalorder %s20, 1
      %s196 = scalar_select %p195, %s20, 1
      %p197 = scmp.lt.s32.totalorder %s194, 1
      %s198 = scalar_select %p197, %s194, 1
      %s199 = smul.addr %s196, 8
      %s200 = sadd.s32 %s198, %s199
      %s201 = smul.addr %s200, 8
      %s202 = scalar_lea.vmem %s0, %s201
      %p203 = pneg %p51
      %p204 = pneg %p48
      %p205 = pneg %p72
      %p206 = pneg %p69
      %p207 = pneg %p93
      %p208 = pneg %p90
      %p209 = pneg %p121
      %p210 = pneg %p118
      %s211 = smul.u32 2, %s21
      %p212 = scmp.lt.s32.totalorder %s20, 1
      %s213 = scalar_select %p212, %s20, 1
      %p214 = scmp.lt.s32.totalorder %s211, 1
      %s215 = scalar_select %p214, %s211, 1
      %s216 = smul.addr %s213, 2
      %s217 = sadd.s32 %s215, %s216
      %s218 = smul.addr %s217, 8
      %s219 = scalar_lea.vmem %s3, %s218
      %p220 = pneg %p149
      %p221 = pneg %p146
      %s222 = smul.u32 2, %s21
      %p223 = scmp.lt.s32.totalorder %s20, 1
      %s224 = scalar_select %p223, %s20, 1
      %p225 = scmp.lt.s32.totalorder %s222, 1
      %s226 = scalar_select %p225, %s222, 1
      %s227 = smul.addr %s224, 2
      %s228 = sadd.s32 %s226, %s227
      %s229 = scalar_lea.vmem %s4, %s228
      %s230 = smul.u32 2, %s21
      %p231 = scmp.lt.s32.totalorder %s20, 1
      %s232 = scalar_select %p231, %s20, 1
      %p233 = scmp.lt.s32.totalorder %s230, 1
      %s234 = scalar_select %p233, %s230, 1
      %s235 = smul.addr %s232, 8
      %s236 = sadd.s32 %s234, %s235
      %s237 = smul.addr %s236, 8
      %s238 = scalar_lea.vmem %s0, %s237
      %s239 = smul.u32 2, %s21
      %s240 = smul.u32 2, %s21
      %p241 = scmp.lt.s32.totalorder %s20, 1
      %s242 = scalar_select %p241, %s20, 1
      %p243 = scmp.lt.s32.totalorder %s240, 1
      %s244 = scalar_select %p243, %s240, 1
      %s245 = smul.addr %s242, 2
      %s246 = sadd.s32 %s244, %s245
      %s247 = smul.addr %s246, 8
      %s248 = scalar_lea.vmem %s3, %s247
      %s249 = smul.u32 2, %s21
      %s250 = smul.u32 2, %s21
      %p251 = scmp.lt.s32.totalorder %s20, 1
      %s252 = scalar_select %p251, %s20, 1
      %p253 = scmp.lt.s32.totalorder %s250, 1
      %s254 = scalar_select %p253, %s250, 1
      %s255 = smul.addr %s252, 2
      %s256 = sadd.s32 %s254, %s255
      %s257 = scalar_lea.vmem %s4, %s256
      %s258 = smul.u32 2, %s21
      %v260 = vld [vmem:[%s238] sm:$0xff]
      %v261 = vld [vmem:[%s238 + $0x8] sm:$0xff]
      %v262 = vld [vmem:[%s238 + $0x10] sm:$0xff]
      %v263 = vld [vmem:[%s238 + $0x18] sm:$0xff]
      %v264 = vld [vmem:[%s238 + $0x20] sm:$0xff]
      %v265 = vld [vmem:[%s238 + $0x28] sm:$0xff]
      %v266 = vld [vmem:[%s238 + $0x30] sm:$0xff]
      %v267 = vld [vmem:[%s238 + $0x38] sm:$0xff]
      %v268 = vpack.c.bf16 %v262, %v260
      %v269 = vpack.c.bf16 %v263, %v261
      %v270 = vpack.c.bf16 %v266, %v264
      %v271 = vpack.c.bf16 %v267, %v265
      %v272 = vld [vmem:[%s1] sm:$0xf]
      %v273 = vld [vmem:[%s1 + $0x4] sm:$0xf]
      %v274 = vld [vmem:[%s2] sm:$0xff]
      %v275 = vld [vmem:[%s2 + $0x8] sm:$0xff]
      %277 = vset.pattern.permute.xlu0 0
      %278 = vperm.xlu0 %277, %v274
      %v279 = vpop.permute.xlu0 %278
      %282 = vset.pattern.permute.xlu0 0
      %283 = vperm.xlu0 %282, %v275
      %v284 = vpop.permute.xlu0 %283
      %v288 = vunpack.c.l.b16 %v272
      %v289 = vunpack.c.l.b16 %v273
      %v290 = vpack.c.b16 %v289, %v288
      %vm291 = vcmask 261120
      %v293 = vsel %vm291, %v290, 0
      %295 = vmatprep.subr.bf16.mxu0 %v269
      %296 = vmatpush1.bf16.msra.mxu0 %v268
      %297 = vmatprep.subr.bf16.mxu0 %v271
      %298 = vmatpush1.bf16.msra.mxu0 %v270
      %299 = vmatprep.subr.bf16.mxu0 0
      %300 = vmatpush1.bf16.msra.mxu0 0
      %301 = vmatprep.subr.bf16.mxu0 0
      %302 = vmatpush1.bf16.msra.mxu0 0
      %303 = vmatprep.subr.bf16.mxu0 0
      %304 = vmatpush1.bf16.msra.mxu0 0
      %305 = vmatprep.subr.bf16.mxu0 0
      %306 = vmatpush1.bf16.msra.mxu0 0
      %307 = vmatprep.subr.bf16.mxu0 0
      %308 = vmatpush1.bf16.msra.mxu0 0
      %309 = vmatprep.subr.bf16.mxu0 0
      %310 = vmatpush1.bf16.msra.mxu0 0
      %311 = vmatprep.subr.bf16.mxu0 0
      %312 = vmatpush1.bf16.msra.mxu0 0
      %313 = vmatprep.subr.bf16.mxu0 0
      %314 = vmatpush1.bf16.msra.mxu0 0
      %315 = vmatprep.subr.bf16.mxu0 0
      %316 = vmatpush1.bf16.msra.mxu0 0
      %317 = vmatprep.subr.bf16.mxu0 0
      %318 = vmatpush1.bf16.msra.mxu0 0
      %319 = vmatprep.subr.bf16.mxu0 0
      %320 = vmatpush1.bf16.msra.mxu0 0
      %321 = vmatprep.subr.bf16.mxu0 0
      %322 = vmatpush1.bf16.msra.mxu0 0
      %323 = vmatprep.subr.bf16.mxu0 0
      %324 = vmatpush1.bf16.msra.mxu0 0
      %325 = vmatprep.subr.bf16.mxu0 0
      %326 = vmatpush1.bf16.msra.mxu0 0
      %327 = vmatprep.mubr.bf16.mxu0 0
      %328 = vmatmul.mubr.bf16.gmra.mrb[0].mxu0 %v293
      %v329 = vpop.f32.mrb[0].mxu0
      %v330 = vadd.f32 %v279, %v329
      %v331 = vpop.f32.mrb[0].mxu0
      %v332 = vadd.f32 %v279, %v331
      %v333 = vpop.f32.mrb[0].mxu0
      %v334 = vadd.f32 %v284, %v333
      %v335 = vpop.f32.mrb[0].mxu0
      %v336 = vadd.f32 %v284, %v335
      %337 = vdwg.mxu0
      %338 = vst [vmem:[%s248] sm:$0xff] %v330
      %339 = vst [vmem:[%s248 + $0x8] sm:$0xff] %v332
      %v342 = vcombine.low %v334, %v336
      %v344 = vunpack.c.l.s4 1966171168
      %v345 = vunpack.c.0.s8 %v344
      %v346 = vlaneseq
      %v347 = vshrl.u32 %v346, 7
      %v348 = vsub.s32 %v345, %v347
      %v349 = vrot.slane %v342, %v348
      %v351 = vunpack.c.l.s4 1966171168
      %v352 = vunpack.c.0.s8 %v351
      %v353 = vlaneseq
      %v354 = vshrl.u32 %v353, 7
      %v355 = vsub.s32 %v352, %v354
      %v356 = vrot.slane %v349, %v355
      %v358 = vlaneseq
      %vm359 = vcmp.ge.s32.totalorder %v358, 0
      %vm360 = vcmp.lt.s32.totalorder %v358, 256
      %vm361 = vmand %vm359, %vm360
      %362 = vst.msk [vmem:[%s257] sm:$0x3] %vm361, %v356
      %s363 = smul.u32 2, %s21
      %p364 = scmp.lt.s32.totalorder %s20, 1
      %s365 = scalar_select %p364, %s20, 1
      %p366 = scmp.lt.s32.totalorder %s363, 1
      %s367 = scalar_select %p366, %s363, 1
      %s368 = smul.addr %s365, 2
      %s369 = sadd.s32 %s367, %s368
      %s370 = smul.addr %s369, 8
      %s371 = scalar_lea.vmem %s3, %s370
      %s372 = smul.u32 2, %s21
      %p373 = scmp.lt.s32.totalorder %s20, 1
      %s374 = scalar_select %p373, %s20, 1
      %p375 = scmp.lt.s32.totalorder %s372, 1
      %s376 = scalar_select %p375, %s372, 1
      %s377 = smul.addr %s374, 2
      %s378 = sadd.s32 %s376, %s377
      %s379 = scalar_lea.vmem %s4, %s378
      // Predicated region
      $region33: #{_mt_decoder_forward.1} parent=31 // pred_check
        %p380 = pneg %p118
      $region34: #{_mt_decoder_forward.1} parent=31 // pred_check_branch
        %382 = sbr.rel (%p380) target = $region36
      $region35: #{_mt_decoder_forward.1} parent=31 // pred_region
        %s383 = smul.u32 2, %s21
      $region36: #{_mt_decoder_forward.1} parent=31 // pred_fallthru
        _
      // Predicated region
      $region37: #{_mt_decoder_forward.1} parent=31 // pred_check
        %p384 = pneg %p146
      $region38: #{_mt_decoder_forward.1} parent=31 // pred_check_branch
        %386 = sbr.rel (%p384) target = $region40
      $region39: #{_mt_decoder_forward.1} parent=31 // pred_region
        %s387 = smul.u32 2, %s21
      $region40: #{_mt_decoder_forward.1} parent=31 // pred_fallthru
        _
    $region32: #{_mt_decoder_forward.1} parent=5 // pred_fallthru
      _
    %p388 = scmp.le.s32.totalorder 2, %s11
    // Predicated region
    $region41: #{_mt_decoder_forward.1} parent=5 // pred_check
      %p389 = pneg %p388
    $region42: #{_mt_decoder_forward.1} parent=5 // pred_check_branch
      %391 = sbr.rel (%p389) target = $region44
    $region43: #{_mt_decoder_forward.1} parent=5 // pred_region
      %s392 = ssub.s32 %s11, 2
      // Predicated region
      $region45: #{_mt_decoder_forward.1} parent=43 // pred_check
        %p393 = pneg %p124
      $region46: #{_mt_decoder_forward.1} parent=43 // pred_check_branch
        %395 = sbr.rel (%p393) target = $region48
      $region47: #{_mt_decoder_forward.1} parent=43 // pred_region
        %s396 = smul.u32 2, %s23
        %p397 = scmp.lt.s32.totalorder %s22, 1
        %s398 = scalar_select %p397, %s22, 1
        %p399 = scmp.lt.s32.totalorder %s396, 1
        %s400 = scalar_select %p399, %s396, 1
        %s401 = smul.addr %s398, 2
        %s402 = sadd.s32 %s400, %s401
        %s403 = smul.addr %s402, 8
        %s404 = scalar_lea.vmem %s3, %s403
      $region48: #{_mt_decoder_forward.1} parent=43 // pred_fallthru
        _
      // Predicated region
      $region49: #{_mt_decoder_forward.1} parent=43 // pred_check
        %p405 = pneg %p152
      $region50: #{_mt_decoder_forward.1} parent=43 // pred_check_branch
        %407 = sbr.rel (%p405) target = $region52
      $region51: #{_mt_decoder_forward.1} parent=43 // pred_region
        %s408 = smul.u32 2, %s23
        %p409 = scmp.lt.s32.totalorder %s22, 1
        %s410 = scalar_select %p409, %s22, 1
        %p411 = scmp.lt.s32.totalorder %s408, 1
        %s412 = scalar_select %p411, %s408, 1
        %s413 = smul.addr %s410, 2
        %s414 = sadd.s32 %s412, %s413
        %s415 = scalar_lea.vmem %s4, %s414
      $region52: #{_mt_decoder_forward.1} parent=43 // pred_fallthru
        _
    $region44: #{_mt_decoder_forward.1} parent=5 // pred_fallthru
      _
  $region6: #{_mt_decoder_forward.1} parent=0 // loop_footer
    %s15 = sadd.s32 1, %s11
  $region7: #{_mt_decoder_forward.1} parent=0 // loop_footer_branch
    %10 = sbr.rel target = $region3
  $region8: #{_mt_decoder_forward.1} parent=0 // loop_exit
    _

</llo_original>
